<compile_context>
chip_gen: v7x
topology: tpu7x:2x2x1
jax: 0.10.0
libtpu: 0.0.40
codegen_flags: <defaults>
</compile_context>

<pallas_src>
import functools

import jax
import jax.numpy as jnp
from jax.experimental import pallas as pl
from jax.experimental.pallas import tpu as pltpu


# ---------------------------------------------------------------------------
# shared gate math — valid both inside a Pallas kernel body and as plain JAX
# ---------------------------------------------------------------------------
def _gate_from_pooled(avg, mx, w1a_t, w2a_t, w1m_t, w2m_t):
    """avg, mx: (B, C) f32 pooled features. Weights pre-transposed:
       w1*_t: (C, C//r), w2*_t: (C//r, C). Returns sigmoid gate (B, C) f32."""
    h_a = jnp.maximum(jnp.dot(avg, w1a_t, preferred_element_type=jnp.float32), 0.0)
    avg_feat = jnp.dot(h_a, w2a_t, preferred_element_type=jnp.float32)      # (B, C)
    h_m = jnp.maximum(jnp.dot(mx, w1m_t, preferred_element_type=jnp.float32), 0.0)
    max_feat = jnp.dot(h_m, w2m_t, preferred_element_type=jnp.float32)      # (B, C)

    # torch.norm(., dim=0, p=2): L2 over the batch axis -> (1, C)
    max_norm = jnp.sqrt(jnp.sum(max_feat * max_feat, axis=0, keepdims=True))
    avg_norm = jnp.sqrt(jnp.sum(avg_feat * avg_feat, axis=0, keepdims=True))
    inv = 1.0 / (max_norm + avg_norm)          # single divide (NaN on 0 == torch parity)
    return jax.nn.sigmoid((max_norm * inv) * max_feat + (avg_norm * inv) * avg_feat)


# ---------------------------------------------------------------------------
# fused two-phase kernel: x read from HBM once, kept resident in VMEM scratch
#   grid = (2, n_chunks); phase 0 = stream-in + pool + stash, phase 1 = rescale
# ---------------------------------------------------------------------------
def _fused_kernel(x_ref, w1a_ref, w2a_ref, w1m_ref, w2m_ref, o_ref,
                  xcopy, sum_sc, max_sc, g_sc, *, hw, chunk):
    p = pl.program_id(0)            # 0 = pool/stash phase, 1 = rescale phase
    t = pl.program_id(1)            # chunk index within the phase
    nc = pl.num_programs(1)

    @pl.when((p == 0) & (t == 0))
    def _init():
        sum_sc[...] = jnp.zeros_like(sum_sc)
        max_sc[...] = jnp.full_like(max_sc, -jnp.inf)

    @pl.when(p == 0)
    def _pool_and_stash():
        xcopy[t] = x_ref[...]                       # stash for phase 1 (VMEM->VMEM)
        x = x_ref[...].astype(jnp.float32)          # chunk-sized f32 temp only

        def _acc(xs, xm):
            sum_sc[...] += jnp.sum(xs, axis=-1)
            max_sc[...] = jnp.maximum(max_sc[...], jnp.max(xm, axis=-1))

        if hw % chunk:                              # static: a partial final chunk exists
            @pl.when(t < nc - 1)
            def _full():
                _acc(x, x)

            @pl.when(t == nc - 1)
            def _masked():                          # mask only the final chunk
                lane = jax.lax.broadcasted_iota(jnp.int32, x.shape, 2)
                valid = (t * chunk + lane) < hw
                _acc(jnp.where(valid, x, 0.0), jnp.where(valid, x, -jnp.inf))
        else:
            _acc(x, x)

    @pl.when((p == 1) & (t == 0))
    def _gate():
        gate = _gate_from_pooled(sum_sc[...] * (1.0 / hw), max_sc[...],
                                 w1a_ref[...], w2a_ref[...],
                                 w1m_ref[...], w2m_ref[...])
        # (B, C, 1) with C on sublanes -> stride-0 lane broadcast in the rescale
        g_sc[...] = gate[:, :, None].astype(g_sc.dtype)

    @pl.when(p == 1)
    def _rescale():
        o_ref[...] = (xcopy[t] * g_sc[...]).astype(o_ref.dtype)


# ---------------------------------------------------------------------------
# tiled two-pass kernels (x too large for VMEM residency)
# ---------------------------------------------------------------------------
def _pool_kernel(x_ref, sum_ref, max_ref, *, hw, thw, n_tiles, ncores, tpc):
    """Streaming sum / running-max over lane-dense HW tiles.
    grid = (ncores["parallel"], tpc["arbitrary"]); core c handles global tiles
    [c*(n_tiles-tpc), c*(n_tiles-tpc)+tpc) -> overlaps by one tile when the
    tile count is odd; the duplicate step is skipped in-kernel."""
    c = pl.program_id(0)
    t = pl.program_id(1)
    tg = c * (n_tiles - tpc) + t              # global HW-tile index for this step

    @pl.when(t == 0)
    def _init():
        sum_ref[...] = jnp.zeros_like(sum_ref)
        max_ref[...] = jnp.full_like(max_ref, -jnp.inf)

    x = x_ref[...].astype(jnp.float32)        # (B, C, thw)

    def _acc(xs, xm):
        sum_ref[...] += jnp.sum(xs, axis=-1)[None]
        max_ref[...] = jnp.maximum(max_ref[...], jnp.max(xm, axis=-1)[None])

    def _acc_plain():
        _acc(x, x)

    def _acc_masked():
        lane = jax.lax.broadcasted_iota(jnp.int32, x.shape, 2)
        valid = (tg * thw + lane) < hw
        _acc(jnp.where(valid, x, 0.0), jnp.where(valid, x, -jnp.inf))

    has_dup = (ncores * tpc != n_tiles)       # static: odd tile count split over 2 cores
    partial = (hw % thw != 0)                 # static: final tile extends past HW
    not_dup = jnp.logical_or(c == 0, t > 0) if has_dup else None
    is_last = tg == n_tiles - 1

    if has_dup and partial:
        pl.when(not_dup & jnp.logical_not(is_last))(_acc_plain)
        pl.when(not_dup & is_last)(_acc_masked)
    elif has_dup:
        pl.when(not_dup)(_acc_plain)
    elif partial:
        pl.when(jnp.logical_not(is_last))(_acc_plain)
        pl.when(is_last)(_acc_masked)
    else:
        _acc_plain()


def _rescale_kernel(g_ref, x_ref, o_ref):
    # gate arrives pre-cast, pre-shaped (B, C, 1): pure lane broadcast, no relayout
    o_ref[...] = (x_ref[...] * g_ref[...]).astype(o_ref.dtype)


# ---------------------------------------------------------------------------
# wrapper / dispatch
# ---------------------------------------------------------------------------
def _physical_vmem_bytes():
    try:
        return int(pltpu.get_tpu_info().vmem_capacity_bytes)
    except Exception:
        return 64 << 20  # conservative fallback: v7x per-TensorCore VMEM


def _pick_fused_chunk(B, C, HW, itemsize):
    """Lane-dense chunk (~2 MiB of x per chunk) for the fused two-phase kernel."""
    bpl = max(1, B * C * itemsize)
    chunk = max(128, ((2 << 20) // bpl) // 128 * 128)
    return HW if chunk >= HW else int(chunk)


def _pick_hw_tile(B, C, HW, itemsize, vmem_cap):
    """Largest lane-dense HW tile such that the rescale pass's live buffers
    (in x2 + out x2, plus f32 temporaries in the pool pass) fit the budget."""
    if HW <= 512:
        return HW                               # block == full dim is legal
    budget = min(int(vmem_cap * 0.6), 96 << 20)
    per_lane = B * C * itemsize
    per_lane_live = 4 * per_lane + 2 * B * C * 4    # 4 buffered tiles + f32 temps
    thw = (budget // max(1, per_lane_live)) // 128 * 128
    thw = min(thw, max(128, ((16 << 20) // per_lane) // 128 * 128))  # ~16 MiB/step cap
    thw = max(thw, 128)
    thw = min(thw, pl.cdiv(HW, 128) * 128)
    return int(thw)


def channel_attention(x, w1_avg, w2_avg, w1_max, w2_max, *,
                      force_tiled=False, hw_tile=None, fused_chunk=None):
    """x: (B, C, H, W) NCHW. Conv weights in PyTorch Conv2d layout (bias=False):
       w1_*: (C//r, C, 1, 1), w2_*: (C, C//r, 1, 1)."""
    B, C, H, W = x.shape
    HW = H * W
    itemsize = x.dtype.itemsize
    x3 = x.reshape(B, C, HW)

    # 1x1 conv on pooled (B, C, 1, 1): out = pooled @ W.T -> pre-transpose once.
    f32 = jnp.float32
    w1a_t = w1_avg[:, :, 0, 0].astype(f32).T          # (C, C//r)
    w2a_t = w2_avg[:, :, 0, 0].astype(f32).T          # (C//r, C)
    w1m_t = w1_max[:, :, 0, 0].astype(f32).T
    w2m_t = w2_max[:, :, 0, 0].astype(f32).T

    vmem_cap = _physical_vmem_bytes()
    cpad = -(-C // 16) * 16                            # sublane-padding upper bound

    # --------- fused path: x resident in VMEM once -> 2x HBM traffic ---------
    chunk = fused_chunk if fused_chunk is not None else _pick_fused_chunk(
        B, C, HW, itemsize)
    n_chunks = pl.cdiv(HW, chunk)
    lane_bytes = B * cpad * itemsize
    fused_bytes = (n_chunks * chunk * lane_bytes       # xcopy stash (~= x, padded)
                   + 4 * chunk * lane_bytes            # double-buffered in/out blocks
                   + 2 * chunk * B * cpad * 4          # chunk-sized f32 temporaries
                   + 128 * B * cpad * itemsize         # (B, C, 1) gate scratch (lane pad)
                   + (2 << 20))                        # accumulators, weights, slack
    fused_budget = int(vmem_cap * 0.8)

    if not force_tiled and fused_bytes <= fused_budget:
        fused_limit = int(min(vmem_cap * 0.9,
                              max(32 << 20, fused_bytes + (8 << 20))))
        w_specs = [pl.BlockSpec(w.shape, lambda p, t: (0, 0))
                   for w in (w1a_t, w2a_t, w1m_t, w2m_t)]
        out3 = pl.pallas_call(
            functools.partial(_fused_kernel, hw=HW, chunk=chunk),
            out_shape=jax.ShapeDtypeStruct((B, C, HW), x.dtype),
            grid=(2, n_chunks),
            in_specs=[
                # phase 0 reads chunk t; phase 1 keeps the index pinned at the
                # last-fetched chunk -> no re-fetch (x read from HBM once).
                pl.BlockSpec((B, C, chunk),
                             lambda p, t: (0, 0, t * (1 - p) + (n_chunks - 1) * p)),
            ] + w_specs,
            # output index stays at 0 through phase 0 (nothing written yet, so
            # the deferred writeback only fires after phase 1 writes block 0).
            out_specs=pl.BlockSpec((B, C, chunk), lambda p, t: (0, 0, t * p)),
            scratch_shapes=[
                pltpu.VMEM((n_chunks, B, C, chunk), x.dtype),   # resident x stash
                pltpu.VMEM((B, C), jnp.float32),                # spatial sum
                pltpu.VMEM((B, C), jnp.float32),                # spatial max
                pltpu.VMEM((B, C, 1), x.dtype),                 # gate, pre-laid-out
            ],
            compiler_params=pltpu.CompilerParams(
                dimension_semantics=("arbitrary", "arbitrary"),
                vmem_limit_bytes=fused_limit),
        )(x3, w1a_t, w2a_t, w1m_t, w2m_t)
        return out3.reshape(B, C, H, W)

    # --------- tiled two-pass path: pool -> tiny gate (JAX) -> rescale -------
    thw = hw_tile if hw_tile is not None else _pick_hw_tile(B, C, HW, itemsize,
                                                            vmem_cap)
    n_tiles = pl.cdiv(HW, thw)
    ncores = 2 if n_tiles >= 2 else 1                  # split pool pass over 2 TCs
    tpc = pl.cdiv(n_tiles, ncores)
    tile_bytes = B * cpad * thw * itemsize
    vmem_limit = int(min(vmem_cap * 0.9,
                         max(32 << 20,
                             4 * tile_bytes + 2 * B * cpad * thw * 4 + (8 << 20))))

    # pass 1: streaming pooling; leading "parallel" core axis, per-core partials
    part_sum, part_max = pl.pallas_call(
        functools.partial(_pool_kernel, hw=HW, thw=thw, n_tiles=n_tiles,
                          ncores=ncores, tpc=tpc),
        out_shape=(jax.ShapeDtypeStruct((ncores, B, C), jnp.float32),
                   jax.ShapeDtypeStruct((ncores, B, C), jnp.float32)),
        grid=(ncores, tpc),
        in_specs=[pl.BlockSpec((B, C, thw),
                               lambda c, t: (0, 0, c * (n_tiles - tpc) + t))],
        out_specs=(pl.BlockSpec((1, B, C), lambda c, t: (c, 0, 0)),
                   pl.BlockSpec((1, B, C), lambda c, t: (c, 0, 0))),
        compiler_params=pltpu.CompilerParams(
            dimension_semantics=("parallel", "arbitrary"),
            vmem_limit_bytes=vmem_limit),
    )(x3)

    sums = jnp.sum(part_sum, axis=0)                   # combine per-core partials
    maxs = jnp.max(part_max, axis=0)

    # tiny O(B*C) gate math in plain JAX between the passes
    gate = _gate_from_pooled(sums * (1.0 / HW), maxs, w1a_t, w2a_t, w1m_t, w2m_t)
    gate3 = gate[:, :, None].astype(x.dtype)           # (B, C, 1): pre-cast, pre-laid-out

    # pass 2: channel-wise rescale; independent HW tiles -> "parallel"
    out3 = pl.pallas_call(
        _rescale_kernel,
        out_shape=jax.ShapeDtypeStruct((B, C, HW), x.dtype),
        grid=(n_tiles,),
        in_specs=[pl.BlockSpec((B, C, 1), lambda t: (0, 0, 0)),
                  pl.BlockSpec((B, C, thw), lambda t: (0, 0, t))],
        out_specs=pl.BlockSpec((B, C, thw), lambda t: (0, 0, t)),
        compiler_params=pltpu.CompilerParams(
            dimension_semantics=("parallel",), vmem_limit_bytes=vmem_limit),
    )(gate3, x3)
    return out3.reshape(B, C, H, W)


# ---------------------------------------------------------------------------
# pure-JAX reference mirroring the PyTorch forward
# ---------------------------------------------------------------------------
def channel_attention_ref(x, w1_avg, w2_avg, w1_max, w2_max):
    avg = jnp.mean(x, axis=(2, 3))                     # (B, C)
    mx = jnp.max(x, axis=(2, 3))                       # (B, C)
    w1a = w1_avg[:, :, 0, 0]; w2a = w2_avg[:, :, 0, 0]
    w1m = w1_max[:, :, 0, 0]; w2m = w2_max[:, :, 0, 0]
    avg_feat = jnp.maximum(avg @ w1a.T, 0.0) @ w2a.T
    max_feat = jnp.maximum(mx @ w1m.T, 0.0) @ w2m.T
    max_n = jnp.linalg.norm(max_feat, axis=0)
    avg_n = jnp.linalg.norm(avg_feat, axis=0)
    wt1 = max_n / (max_n + avg_n)
    wt2 = avg_n / (max_n + avg_n)
    gate = jax.nn.sigmoid(wt1[None] * max_feat + wt2[None] * avg_feat)
    return x * gate[:, :, None, None]


if __name__ == "__main__":
    key = jax.random.PRNGKey(0)
    B, C, H, W, rate = 2, 8, 16, 16, 4
    Cr = C // rate
    kx, k1, k2, k3, k4, k5, k6 = jax.random.split(key, 7)
    x = jax.random.normal(kx, (B, C, H, W), dtype=jnp.float32)
    w1_avg = jax.random.normal(k1, (Cr, C, 1, 1), dtype=jnp.float32) * 0.2
    w2_avg = jax.random.normal(k2, (C, Cr, 1, 1), dtype=jnp.float32) * 0.2
    w1_max = jax.random.normal(k3, (Cr, C, 1, 1), dtype=jnp.float32) * 0.2
    w2_max = jax.random.normal(k4, (C, Cr, 1, 1), dtype=jnp.float32) * 0.2
    ws = (w1_avg, w2_avg, w1_max, w2_max)

    def check(name, out, ref):
        out = jax.block_until_ready(out)
        assert jnp.allclose(out, ref, atol=1e-5, rtol=1e-5), f"{name} mismatch"

    y_ref = channel_attention_ref(x, *ws)

    # fused path: single chunk, multi-chunk (exercises the two-phase pipeline)
    check("fused/1-chunk", channel_attention(x, *ws), y_ref)
    check("fused/2-chunk", channel_attention(x, *ws, fused_chunk=128), y_ref)

    # tiled path: even tile count (2-core pool split), single tile
    check("tiled/even", channel_attention(x, *ws, force_tiled=True, hw_tile=128), y_ref)
    check("tiled/1-tile", channel_attention(x, *ws, force_tiled=True), y_ref)

    # spatial extent not a multiple of 128 -> masked final chunk / tile
    x2 = jax.random.normal(k5, (B, C, 12, 12), dtype=jnp.float32)
    y2_ref = channel_attention_ref(x2, *ws)
    check("fused/partial-chunk", channel_attention(x2, *ws, fused_chunk=128), y2_ref)
    check("fused/full-dim-chunk", channel_attention(x2, *ws), y2_ref)
    check("tiled/partial", channel_attention(x2, *ws, force_tiled=True, hw_tile=128), y2_ref)

    # odd tile count -> core-1 overlap tile skipped exactly once + masked last tile
    x3_ = jax.random.normal(k6, (B, C, 16, 20), dtype=jnp.float32)
    y3_ref = channel_attention_ref(x3_, *ws)
    check("tiled/odd+partial",
          channel_attention(x3_, *ws, force_tiled=True, hw_tile=128), y3_ref)

    print("KERNEL_OK")
</pallas_src>

<mosaic_0001>
module attributes {stable_mosaic.version = 11 : i64} {
  func.func @_fused_kernel(%arg0: i32, %arg1: i32, %arg2: memref<2x8x256xf32, #tpu.memory_space<vmem>>, %arg3: memref<8x2xf32, #tpu.memory_space<vmem>>, %arg4: memref<2x8xf32, #tpu.memory_space<vmem>>, %arg5: memref<8x2xf32, #tpu.memory_space<vmem>>, %arg6: memref<2x8xf32, #tpu.memory_space<vmem>>, %arg7: memref<2x8x256xf32, #tpu.memory_space<vmem>>, %arg8: memref<1x2x8x256xf32, #tpu.memory_space<vmem>>, %arg9: memref<2x8xf32, #tpu.memory_space<vmem>>, %arg10: memref<2x8xf32, #tpu.memory_space<vmem>>, %arg11: memref<2x8x1xf32, #tpu.memory_space<vmem>>) attributes {dimension_semantics = [#tpu.dimension_semantics<arbitrary>, #tpu.dimension_semantics<arbitrary>], iteration_bounds = array<i64: 2, 1>, scalar_prefetch = 0 : i64, scratch_operands = 4 : i64, tpu.core_type = #tpu.core_type<tc>, window_params = [{transform_indices = @transform_0, window_bounds = array<i64: 2, 8, 256>}, {pipeline_mode = #tpu.pipeline_mode<synchronous>, transform_indices = @transform_1, window_bounds = array<i64: 8, 2>}, {pipeline_mode = #tpu.pipeline_mode<synchronous>, transform_indices = @transform_2, window_bounds = array<i64: 2, 8>}, {pipeline_mode = #tpu.pipeline_mode<synchronous>, transform_indices = @transform_3, window_bounds = array<i64: 8, 2>}, {pipeline_mode = #tpu.pipeline_mode<synchronous>, transform_indices = @transform_4, window_bounds = array<i64: 2, 8>}, {transform_indices = @transform_5, window_bounds = array<i64: 2, 8, 256>}]} {
    %c0_i32 = arith.constant 0 : i32
    %0 = arith.cmpi eq, %arg0, %c0_i32 : i32
    %c0_i32_0 = arith.constant 0 : i32
    %1 = arith.cmpi eq, %arg1, %c0_i32_0 : i32
    %2 = arith.andi %0, %1 : i1
    %3 = arith.extui %2 : i1 to i32
    %c0_i32_1 = arith.constant 0 : i32
    %4 = arith.cmpi ne, %3, %c0_i32_1 : i32
    scf.if %4 {
      %cst = arith.constant 0.000000e+00 : f32
      %16 = vector.broadcast %cst : f32 to vector<2x8xf32>
      %c0 = arith.constant 0 : index
      %c0_8 = arith.constant 0 : index
      %17 = vector.load %arg9[%c0, %c0_8] : memref<2x8xf32, #tpu.memory_space<vmem>>, vector<2x8xf32>
      tpu.vector_store %arg9[%c0, %c0_8], %16 {strides = array<i32>} : memref<2x8xf32, #tpu.memory_space<vmem>>, vector<2x8xf32>,
      %cst_9 = arith.constant 0xFF800000 : f32
      %18 = vector.broadcast %cst_9 : f32 to vector<2x8xf32>
      %c0_10 = arith.constant 0 : index
      %c0_11 = arith.constant 0 : index
      %19 = vector.load %arg10[%c0_10, %c0_11] : memref<2x8xf32, #tpu.memory_space<vmem>>, vector<2x8xf32>
      tpu.vector_store %arg10[%c0_10, %c0_11], %18 {strides = array<i32>} : memref<2x8xf32, #tpu.memory_space<vmem>>, vector<2x8xf32>,
    } else {
    }
    %c0_i32_2 = arith.constant 0 : i32
    %5 = arith.cmpi eq, %arg0, %c0_i32_2 : i32
    %6 = arith.extui %5 : i1 to i32
    %c0_i32_3 = arith.constant 0 : i32
    %7 = arith.cmpi ne, %6, %c0_i32_3 : i32
    scf.if %7 {
      %c0 = arith.constant 0 : index
      %c0_8 = arith.constant 0 : index
      %c0_9 = arith.constant 0 : index
      %16 = vector.load %arg2[%c0, %c0_8, %c0_9] : memref<2x8x256xf32, #tpu.memory_space<vmem>>, vector<2x8x256xf32>
      %17 = arith.index_cast %arg1 : i32 to index
      %c0_10 = arith.constant 0 : index
      %c0_11 = arith.constant 0 : index
      %c0_12 = arith.constant 0 : index
      %18 = vector.load %arg8[%17, %c0_10, %c0_11, %c0_12] : memref<1x2x8x256xf32, #tpu.memory_space<vmem>>, vector<1x2x8x256xf32>
      %19 = vector.shape_cast %18 : vector<1x2x8x256xf32> to vector<2x8x256xf32>
      %20 = vector.shape_cast %16 : vector<2x8x256xf32> to vector<1x2x8x256xf32>
      tpu.vector_store %arg8[%17, %c0_10, %c0_11, %c0_12], %20 {strides = array<i32>} : memref<1x2x8x256xf32, #tpu.memory_space<vmem>>, vector<1x2x8x256xf32>,
      %c0_13 = arith.constant 0 : index
      %c0_14 = arith.constant 0 : index
      %c0_15 = arith.constant 0 : index
      %21 = vector.load %arg2[%c0_13, %c0_14, %c0_15] : memref<2x8x256xf32, #tpu.memory_space<vmem>>, vector<2x8x256xf32>
      %c0_16 = arith.constant 0 : index
      %c0_17 = arith.constant 0 : index
      %22 = vector.load %arg9[%c0_16, %c0_17] : memref<2x8xf32, #tpu.memory_space<vmem>>, vector<2x8xf32>
      %cst = arith.constant dense<0.000000e+00> : vector<2x8xf32>
      %23 = vector.multi_reduction <add>, %21, %cst [2] : vector<2x8x256xf32> to vector<2x8xf32>
      %24 = arith.addf %22, %23 : vector<2x8xf32>
      %c0_18 = arith.constant 0 : index
      %c0_19 = arith.constant 0 : index
      %25 = vector.load %arg9[%c0_18, %c0_19] : memref<2x8xf32, #tpu.memory_space<vmem>>, vector<2x8xf32>
      tpu.vector_store %arg9[%c0_18, %c0_19], %24 {strides = array<i32>} : memref<2x8xf32, #tpu.memory_space<vmem>>, vector<2x8xf32>,
      %c0_20 = arith.constant 0 : index
      %c0_21 = arith.constant 0 : index
      %26 = vector.load %arg10[%c0_20, %c0_21] : memref<2x8xf32, #tpu.memory_space<vmem>>, vector<2x8xf32>
      %cst_22 = arith.constant dense<0xFF800000> : vector<2x8xf32>
      %27 = vector.multi_reduction <maximumf>, %21, %cst_22 [2] : vector<2x8x256xf32> to vector<2x8xf32>
      %28 = arith.maximumf %26, %27 : vector<2x8xf32>
      %c0_23 = arith.constant 0 : index
      %c0_24 = arith.constant 0 : index
      %29 = vector.load %arg10[%c0_23, %c0_24] : memref<2x8xf32, #tpu.memory_space<vmem>>, vector<2x8xf32>
      tpu.vector_store %arg10[%c0_23, %c0_24], %28 {strides = array<i32>} : memref<2x8xf32, #tpu.memory_space<vmem>>, vector<2x8xf32>,
    } else {
    }
    %c1_i32 = arith.constant 1 : i32
    %8 = arith.cmpi eq, %arg0, %c1_i32 : i32
    %c0_i32_4 = arith.constant 0 : i32
    %9 = arith.cmpi eq, %arg1, %c0_i32_4 : i32
    %10 = arith.andi %8, %9 : i1
    %11 = arith.extui %10 : i1 to i32
    %c0_i32_5 = arith.constant 0 : i32
    %12 = arith.cmpi ne, %11, %c0_i32_5 : i32
    scf.if %12 {
      %c0 = arith.constant 0 : index
      %c0_8 = arith.constant 0 : index
      %16 = vector.load %arg9[%c0, %c0_8] : memref<2x8xf32, #tpu.memory_space<vmem>>, vector<2x8xf32>
      %cst = arith.constant 3.906250e-03 : f32
      %17 = vector.broadcast %cst : f32 to vector<2x8xf32>
      %18 = arith.mulf %16, %17 : vector<2x8xf32>
      %c0_9 = arith.constant 0 : index
      %c0_10 = arith.constant 0 : index
      %19 = vector.load %arg10[%c0_9, %c0_10] : memref<2x8xf32, #tpu.memory_space<vmem>>, vector<2x8xf32>
      %c0_11 = arith.constant 0 : index
      %c0_12 = arith.constant 0 : index
      %20 = vector.load %arg3[%c0_11, %c0_12] : memref<8x2xf32, #tpu.memory_space<vmem>>, vector<8x2xf32>
      %c0_13 = arith.constant 0 : index
      %c0_14 = arith.constant 0 : index
      %21 = vector.load %arg4[%c0_13, %c0_14] : memref<2x8xf32, #tpu.memory_space<vmem>>, vector<2x8xf32>
      %c0_15 = arith.constant 0 : index
      %c0_16 = arith.constant 0 : index
      %22 = vector.load %arg5[%c0_15, %c0_16] : memref<8x2xf32, #tpu.memory_space<vmem>>, vector<8x2xf32>
      %c0_17 = arith.constant 0 : index
      %c0_18 = arith.constant 0 : index
      %23 = vector.load %arg6[%c0_17, %c0_18] : memref<2x8xf32, #tpu.memory_space<vmem>>, vector<2x8xf32>
      %cst_19 = arith.constant dense<0.000000e+00> : vector<2x2xf32>
      %24 = tpu.matmul %18, %20, %cst_19 {dimension_numbers = #tpu.dot_dimension_numbers<[1], [0], [0], [1], [0, 0, 1, 1], [], []>} : vector<2x8xf32>, vector<8x2xf32>, vector<2x2xf32> -> vector<2x2xf32>
      %cst_20 = arith.constant 0.000000e+00 : f32
      %25 = vector.broadcast %cst_20 : f32 to vector<2x2xf32>
      %26 = arith.maximumf %24, %25 : vector<2x2xf32>
      %cst_21 = arith.constant dense<0.000000e+00> : vector<2x8xf32>
      %27 = tpu.matmul %26, %21, %cst_21 {dimension_numbers = #tpu.dot_dimension_numbers<[1], [0], [0], [1], [0, 0, 1, 1], [], []>} : vector<2x2xf32>, vector<2x8xf32>, vector<2x8xf32> -> vector<2x8xf32>
      %cst_22 = arith.constant dense<0.000000e+00> : vector<2x2xf32>
      %28 = tpu.matmul %19, %22, %cst_22 {dimension_numbers = #tpu.dot_dimension_numbers<[1], [0], [0], [1], [0, 0, 1, 1], [], []>} : vector<2x8xf32>, vector<8x2xf32>, vector<2x2xf32> -> vector<2x2xf32>
      %cst_23 = arith.constant 0.000000e+00 : f32
      %29 = vector.broadcast %cst_23 : f32 to vector<2x2xf32>
      %30 = arith.maximumf %28, %29 : vector<2x2xf32>
      %cst_24 = arith.constant dense<0.000000e+00> : vector<2x8xf32>
      %31 = tpu.matmul %30, %23, %cst_24 {dimension_numbers = #tpu.dot_dimension_numbers<[1], [0], [0], [1], [0, 0, 1, 1], [], []>} : vector<2x2xf32>, vector<2x8xf32>, vector<2x8xf32> -> vector<2x8xf32>
      %32 = arith.mulf %31, %31 : vector<2x8xf32>
      %cst_25 = arith.constant dense<0.000000e+00> : vector<8xf32>
      %33 = vector.multi_reduction <add>, %32, %cst_25 [0] : vector<2x8xf32> to vector<8xf32>
      %34 = vector.shape_cast %33 : vector<8xf32> to vector<1x8xf32>
      %35 = math.sqrt %34 : vector<1x8xf32>
      %36 = arith.mulf %27, %27 : vector<2x8xf32>
      %cst_26 = arith.constant dense<0.000000e+00> : vector<8xf32>
      %37 = vector.multi_reduction <add>, %36, %cst_26 [0] : vector<2x8xf32> to vector<8xf32>
      %38 = vector.shape_cast %37 : vector<8xf32> to vector<1x8xf32>
      %39 = math.sqrt %38 : vector<1x8xf32>
      %40 = arith.addf %35, %39 : vector<1x8xf32>
      %cst_27 = arith.constant 1.000000e+00 : f32
      %41 = vector.broadcast %cst_27 : f32 to vector<1x8xf32>
      %42 = arith.divf %41, %40 : vector<1x8xf32>
      %43 = arith.mulf %35, %42 : vector<1x8xf32>
      %44 = vector.broadcast %43 : vector<1x8xf32> to vector<2x8xf32>
      %45 = arith.mulf %44, %31 : vector<2x8xf32>
      %46 = arith.mulf %39, %42 : vector<1x8xf32>
      %47 = vector.broadcast %46 : vector<1x8xf32> to vector<2x8xf32>
      %48 = arith.mulf %47, %27 : vector<2x8xf32>
      %49 = arith.addf %45, %48 : vector<2x8xf32>
      %50 = arith.negf %49 : vector<2x8xf32>
      %51 = math.exp %50 : vector<2x8xf32>
      %cst_28 = arith.constant 1.000000e+00 : f32
      %52 = vector.broadcast %cst_28 : f32 to vector<2x8xf32>
      %53 = arith.addf %52, %51 : vector<2x8xf32>
      %54 = arith.divf %52, %53 : vector<2x8xf32>
      %55 = vector.shape_cast %54 : vector<2x8xf32> to vector<2x8x1xf32>
      %c0_29 = arith.constant 0 : index
      %c0_30 = arith.constant 0 : index
      %c0_31 = arith.constant 0 : index
      %56 = vector.load %arg11[%c0_29, %c0_30, %c0_31] : memref<2x8x1xf32, #tpu.memory_space<vmem>>, vector<2x8x1xf32>
      tpu.vector_store %arg11[%c0_29, %c0_30, %c0_31], %55 {strides = array<i32>} : memref<2x8x1xf32, #tpu.memory_space<vmem>>, vector<2x8x1xf32>,
    } else {
    }
    %c1_i32_6 = arith.constant 1 : i32
    %13 = arith.cmpi eq, %arg0, %c1_i32_6 : i32
    %14 = arith.extui %13 : i1 to i32
    %c0_i32_7 = arith.constant 0 : i32
    %15 = arith.cmpi ne, %14, %c0_i32_7 : i32
    scf.if %15 {
      %16 = arith.index_cast %arg1 : i32 to index
      %c0 = arith.constant 0 : index
      %c0_8 = arith.constant 0 : index
      %c0_9 = arith.constant 0 : index
      %17 = vector.load %arg8[%16, %c0, %c0_8, %c0_9] : memref<1x2x8x256xf32, #tpu.memory_space<vmem>>, vector<1x2x8x256xf32>
      %18 = vector.shape_cast %17 : vector<1x2x8x256xf32> to vector<2x8x256xf32>
      %c0_10 = arith.constant 0 : index
      %c0_11 = arith.constant 0 : index
      %c0_12 = arith.constant 0 : index
      %19 = vector.load %arg11[%c0_10, %c0_11, %c0_12] : memref<2x8x1xf32, #tpu.memory_space<vmem>>, vector<2x8x1xf32>
      %20 = vector.broadcast %19 : vector<2x8x1xf32> to vector<2x8x256xf32>
      %21 = arith.mulf %18, %20 : vector<2x8x256xf32>
      %c0_13 = arith.constant 0 : index
      %c0_14 = arith.constant 0 : index
      %c0_15 = arith.constant 0 : index
      %22 = vector.load %arg7[%c0_13, %c0_14, %c0_15] : memref<2x8x256xf32, #tpu.memory_space<vmem>>, vector<2x8x256xf32>
      tpu.vector_store %arg7[%c0_13, %c0_14, %c0_15], %21 {strides = array<i32>} : memref<2x8x256xf32, #tpu.memory_space<vmem>>, vector<2x8x256xf32>,
    } else {
    }
    return
  }
  func.func @transform_0(%arg0: i32, %arg1: i32) -> (i32, i32, i32) {
    %c1_i32 = arith.constant 1 : i32
    %0 = arith.subi %c1_i32, %arg0 : i32
    %1 = arith.muli %arg1, %0 : i32
    %c0_i32 = arith.constant 0 : i32
    %2 = arith.muli %c0_i32, %arg0 : i32
    %3 = arith.addi %1, %2 : i32
    %c0_i32_0 = arith.constant 0 : i32
    %c0_i32_1 = arith.constant 0 : i32
    %c0_i32_2 = arith.constant 0 : i32
    return %c0_i32_0, %c0_i32_1, %3 : i32, i32, i32
  }
  func.func @transform_1(%arg0: i32, %arg1: i32) -> (i32, i32) {
    %c0_i32 = arith.constant 0 : i32
    %c0_i32_0 = arith.constant 0 : i32
    %c0_i32_1 = arith.constant 0 : i32
    return %c0_i32, %c0_i32_0 : i32, i32
  }
  func.func @transform_2(%arg0: i32, %arg1: i32) -> (i32, i32) {
    %c0_i32 = arith.constant 0 : i32
    %c0_i32_0 = arith.constant 0 : i32
    %c0_i32_1 = arith.constant 0 : i32
    return %c0_i32, %c0_i32_0 : i32, i32
  }
  func.func @transform_3(%arg0: i32, %arg1: i32) -> (i32, i32) {
    %c0_i32 = arith.constant 0 : i32
    %c0_i32_0 = arith.constant 0 : i32
    %c0_i32_1 = arith.constant 0 : i32
    return %c0_i32, %c0_i32_0 : i32, i32
  }
  func.func @transform_4(%arg0: i32, %arg1: i32) -> (i32, i32) {
    %c0_i32 = arith.constant 0 : i32
    %c0_i32_0 = arith.constant 0 : i32
    %c0_i32_1 = arith.constant 0 : i32
    return %c0_i32, %c0_i32_0 : i32, i32
  }
  func.func @transform_5(%arg0: i32, %arg1: i32) -> (i32, i32, i32) {
    %0 = arith.muli %arg1, %arg0 : i32
    %c0_i32 = arith.constant 0 : i32
    %c0_i32_0 = arith.constant 0 : i32
    %c0_i32_1 = arith.constant 0 : i32
    return %c0_i32, %c0_i32_0, %0 : i32, i32, i32
  }
}

</mosaic_0001>

<llo_original>
// kernel: tpu_custom_call.1
$region0: #{tpu_custom_call.1}
  #allocation0 [shape = 'u32[]', space=smem, size = 0x4, offset = 0x4, fixed_abs, tag = 'smem constant byte address 0x4 - core index']
  #allocation1 [shape = 'u32[144,128]{1,0:T(1,128)}', space=vmem, size = 0x12000, scoped, tag = 'internal scratch']
  #allocation2 [shape = 'f32[1,2,8,256]{3,2,1,0:T(8,128)}', space=vmem, size = 0x4000, scoped, tag = 'scratch operand']
  #allocation3 [shape = 'f32[2,8]{1,0:T(2,128)}', space=vmem, size = 0x400, scoped, tag = 'scratch operand']
  #allocation4 [shape = 'f32[2,8]{1,0:T(2,128)}', space=vmem, size = 0x400, scoped, tag = 'scratch operand']
  #allocation5 [shape = 'f32[2,8,1]{2,1,0:T(8,128)}', space=vmem, size = 0x2000, scoped, tag = 'scratch operand']
  %s0 = inlined_call_operand.hbm [shape: f32[2,8,256], index: 0, kind: input, shape index: {}]
  %s1 = inlined_call_operand.vmem [shape: f32[8,2], index: 1, kind: input, shape index: {}]
  %s2 = inlined_call_operand.vmem [shape: f32[2,8], index: 2, kind: input, shape index: {}]
  %s3 = inlined_call_operand.vmem [shape: f32[8,2], index: 3, kind: input, shape index: {}]
  %s4 = inlined_call_operand.vmem [shape: f32[2,8], index: 4, kind: input, shape index: {}]
  %s5 = inlined_call_operand.hbm [shape: f32[2,8,256], index: 5, kind: output, shape index: {}]
  %s6 = sld [smem:[#allocation0]]
  $region73: #{tpu_custom_call.1} parent=0
    _
  %s8 = ssub.s32 1, %s6
  %s9 = scalar_select 0, %s8, %s6
  $region1: #{tpu_custom_call.1} parent=0
    #allocation6 [shape = 'u8[32768]{0}', space=vmem, size = 0x8000, scoped, tag = 'input window, operand 0']
    #allocation7 [shape = 's32[2]{0}', space=sflag, size = 0x8, scoped, tag = 'scoped memory for tpu_custom_call.1']
    #allocation8 [shape = 's32[2]{0}', space=sflag, size = 0x8, scoped, tag = 'scoped memory for tpu_custom_call.1']
    #allocation9 [shape = 'u8[32768]{0}', space=vmem, size = 0x8000, scoped, tag = 'output window, operand 0']
    %10 = vsyncpa [#allocation7], 0
    %s11 = scalar_lea.sflag [#allocation7], 1
    %12 = vsyncpa %s11, 0
    %13 = vsyncpa [#allocation8], 0
    %s14 = scalar_lea.sflag [#allocation8], 1
    %15 = vsyncpa %s14, 0
    loop: start=0, step=1, limit=4
    $region2: #{tpu_custom_call.1} parent=1 // loop_pre_header
      _
    $region3: #{tpu_custom_call.1} parent=1 // loop_header
      %s17 = sphi 0, %s21
      %p18 = scmp.ge.s32.totalorder %s17, 4
      %s24 = sphi 0, %s36
      %s25 = sphi 0, %s32
      %s26 = sphi 0, %s24
      %s27 = sphi 0, %s25
      %s28 = sphi 0, %s26
      %s29 = sphi 0, %s27
      %s43 = sphi 0, %s45
      %s46 = sphi 0, %s43
      %s47 = sphi 0, %s46
      %s63 = sphi 0, %s47
      %s67 = sphi 0, %s67
      %s69 = sphi 0, %s67
      %s70 = sphi 0, %s69
      %s84 = sphi 0, %s70
      %s88 = sphi 0, %s88
      %s90 = sphi 0, %s88
      %s91 = sphi 0, %s90
      %s105 = sphi 0, %s91
      %s109 = sphi 0, %s109
      %s111 = sphi 0, %s109
      %s112 = sphi 0, %s111
      %s126 = sphi 0, %s112
      %s130 = sphi 0, %s130
      %s132 = sphi 0, %s130
      %s133 = sphi 0, %s132
      %s147 = sphi 0, %s133
      %s155 = sphi 0, %s157
      %s158 = sphi 0, %s155
      %s159 = sphi 0, %s158
      %s175 = sphi 0, %s159
    $region4: #{tpu_custom_call.1} parent=1 // loop_header_branch
      %20 = sbr.rel (%p18) target = $region8
    $region5: #{tpu_custom_call.1} parent=1 // loop_body
      %s22 = ssub.s32 %s17, 1
      %s23 = ssub.s32 %s17, 2
      %s30 = sadd.s32 1, %s25
      %p31 = scmp.ge.s32.totalorder %s30, 1
      %s32 = scalar_select %p31, 0, %s30
      %s33 = sadd.s32 1, %s24
      %s34 = scalar_select %p31, %s33, %s24
      %p35 = scmp.ge.s32.totalorder %s34, 2
      %s36 = scalar_select %p35, 0, %s34
      %s37 = ssub.s32 1, %s24
      %s38 = smul.u32 %s25, %s37
      %s39 = ssub.s32 1, %s36
      %s40 = smul.u32 %s32, %s39
      %s41 = ssub.s32 %s38, %s40
      %p42 = scmp.eq.s32.totalorder %s41, 0
      %s44 = sadd.s32 %s43, 1
      %s45 = scalar_select %p42, %s43, %s44
      %p48 = pneg %p42
      %p49 = scmp.eq.s32.totalorder %s17, 1
      %p50 = por %p48, %p49
      %p51 = scmp.ne.s32.totalorder %s43, %s46
      %p52 = scmp.eq.s32.totalorder %s17, 0
      %p53 = por %p51, %p52
      %p54 = scmp.ne.s32.totalorder %s43, %s46
      %p55 = scmp.eq.s32.totalorder %s22, 1
      %p56 = por %p54, %p55
      %p57 = scmp.ne.s32.totalorder %s46, %s47
      %p58 = scmp.eq.s32.totalorder %s22, 0
      %p59 = por %p57, %p58
      %p60 = scmp.ne.s32.totalorder %s46, %s47
      %p61 = scmp.eq.s32.totalorder %s23, 1
      %p62 = por %p60, %p61
      %p64 = scmp.ne.s32.totalorder %s47, %s63
      %p65 = scmp.eq.s32.totalorder %s23, 0
      %p66 = por %p64, %p65
      %s68 = sadd.s32 %s67, 1
      %p71 = scmp.eq.s32.totalorder %s17, 1
      %p72 = scmp.ne.s32.totalorder %s67, %s69
      %p73 = scmp.eq.s32.totalorder %s17, 0
      %p74 = por %p72, %p73
      %p75 = scmp.ne.s32.totalorder %s67, %s69
      %p76 = scmp.eq.s32.totalorder %s22, 1
      %p77 = por %p75, %p76
      %p78 = scmp.ne.s32.totalorder %s69, %s70
      %p79 = scmp.eq.s32.totalorder %s22, 0
      %p80 = por %p78, %p79
      %p81 = scmp.ne.s32.totalorder %s69, %s70
      %p82 = scmp.eq.s32.totalorder %s23, 1
      %p83 = por %p81, %p82
      %p85 = scmp.ne.s32.totalorder %s70, %s84
      %p86 = scmp.eq.s32.totalorder %s23, 0
      %p87 = por %p85, %p86
      %s89 = sadd.s32 %s88, 1
      %p92 = scmp.eq.s32.totalorder %s17, 1
      %p93 = scmp.ne.s32.totalorder %s88, %s90
      %p94 = scmp.eq.s32.totalorder %s17, 0
      %p95 = por %p93, %p94
      %p96 = scmp.ne.s32.totalorder %s88, %s90
      %p97 = scmp.eq.s32.totalorder %s22, 1
      %p98 = por %p96, %p97
      %p99 = scmp.ne.s32.totalorder %s90, %s91
      %p100 = scmp.eq.s32.totalorder %s22, 0
      %p101 = por %p99, %p100
      %p102 = scmp.ne.s32.totalorder %s90, %s91
      %p103 = scmp.eq.s32.totalorder %s23, 1
      %p104 = por %p102, %p103
      %p106 = scmp.ne.s32.totalorder %s91, %s105
      %p107 = scmp.eq.s32.totalorder %s23, 0
      %p108 = por %p106, %p107
      %s110 = sadd.s32 %s109, 1
      %p113 = scmp.eq.s32.totalorder %s17, 1
      %p114 = scmp.ne.s32.totalorder %s109, %s111
      %p115 = scmp.eq.s32.totalorder %s17, 0
      %p116 = por %p114, %p115
      %p117 = scmp.ne.s32.totalorder %s109, %s111
      %p118 = scmp.eq.s32.totalorder %s22, 1
      %p119 = por %p117, %p118
      %p120 = scmp.ne.s32.totalorder %s111, %s112
      %p121 = scmp.eq.s32.totalorder %s22, 0
      %p122 = por %p120, %p121
      %p123 = scmp.ne.s32.totalorder %s111, %s112
      %p124 = scmp.eq.s32.totalorder %s23, 1
      %p125 = por %p123, %p124
      %p127 = scmp.ne.s32.totalorder %s112, %s126
      %p128 = scmp.eq.s32.totalorder %s23, 0
      %p129 = por %p127, %p128
      %s131 = sadd.s32 %s130, 1
      %p134 = scmp.eq.s32.totalorder %s17, 1
      %p135 = scmp.ne.s32.totalorder %s130, %s132
      %p136 = scmp.eq.s32.totalorder %s17, 0
      %p137 = por %p135, %p136
      %p138 = scmp.ne.s32.totalorder %s130, %s132
      %p139 = scmp.eq.s32.totalorder %s22, 1
      %p140 = por %p138, %p139
      %p141 = scmp.ne.s32.totalorder %s132, %s133
      %p142 = scmp.eq.s32.totalorder %s22, 0
      %p143 = por %p141, %p142
      %p144 = scmp.ne.s32.totalorder %s132, %s133
      %p145 = scmp.eq.s32.totalorder %s23, 1
      %p146 = por %p144, %p145
      %p148 = scmp.ne.s32.totalorder %s133, %s147
      %p149 = scmp.eq.s32.totalorder %s23, 0
      %p150 = por %p148, %p149
      %s151 = smul.u32 %s25, %s24
      %s152 = smul.u32 %s32, %s36
      %s153 = ssub.s32 %s151, %s152
      %p154 = scmp.eq.s32.totalorder %s153, 0
      %s156 = sadd.s32 %s155, 1
      %s157 = scalar_select %p154, %s155, %s156
      %p160 = pneg %p154
      %p161 = scmp.eq.s32.totalorder %s17, 1
      %p162 = por %p160, %p161
      %p163 = scmp.ne.s32.totalorder %s155, %s158
      %p164 = scmp.eq.s32.totalorder %s17, 0
      %p165 = por %p163, %p164
      %p166 = scmp.ne.s32.totalorder %s155, %s158
      %p167 = scmp.eq.s32.totalorder %s22, 1
      %p168 = por %p166, %p167
      %p169 = scmp.ne.s32.totalorder %s158, %s159
      %p170 = scmp.eq.s32.totalorder %s22, 0
      %p171 = por %p169, %p170
      %p172 = scmp.ne.s32.totalorder %s158, %s159
      %p173 = scmp.eq.s32.totalorder %s23, 1
      %p174 = por %p172, %p173
      %p176 = scmp.ne.s32.totalorder %s159, %s175
      %p177 = scmp.eq.s32.totalorder %s23, 0
      %p178 = por %p176, %p177
      %p179 = scmp.le.s32.totalorder 1, %s17
      %p180 = scmp.lt.s32.totalorder %s17, 3
      %p181 = pnand %p179, %p180
      %p182 = pneg %p181
      // Predicated region
      $region9: #{tpu_custom_call.1} parent=5 // pred_check
        _
      $region10: #{tpu_custom_call.1} parent=5 // pred_check_branch
        %184 = sbr.rel (%p181) target = $region12
      $region11: #{tpu_custom_call.1} parent=5 // pred_region
        %s185 = ssub.s32 %s17, 1
        // Predicated region
        $region13: #{tpu_custom_call.1} parent=11 // pred_check
          %p186 = pneg %p80
        $region14: #{tpu_custom_call.1} parent=11 // pred_check_branch
          %188 = sbr.rel (%p186) target = $region16
        $region15: #{tpu_custom_call.1} parent=11 // pred_region
          _
        $region16: #{tpu_custom_call.1} parent=11 // pred_fallthru
          _
        // Predicated region
        $region17: #{tpu_custom_call.1} parent=11 // pred_check
          %p189 = pneg %p101
        $region18: #{tpu_custom_call.1} parent=11 // pred_check_branch
          %191 = sbr.rel (%p189) target = $region20
        $region19: #{tpu_custom_call.1} parent=11 // pred_region
          _
        $region20: #{tpu_custom_call.1} parent=11 // pred_fallthru
          _
        // Predicated region
        $region21: #{tpu_custom_call.1} parent=11 // pred_check
          %p192 = pneg %p122
        $region22: #{tpu_custom_call.1} parent=11 // pred_check_branch
          %194 = sbr.rel (%p192) target = $region24
        $region23: #{tpu_custom_call.1} parent=11 // pred_region
          _
        $region24: #{tpu_custom_call.1} parent=11 // pred_fallthru
          _
        // Predicated region
        $region25: #{tpu_custom_call.1} parent=11 // pred_check
          %p195 = pneg %p143
        $region26: #{tpu_custom_call.1} parent=11 // pred_check_branch
          %197 = sbr.rel (%p195) target = $region28
        $region27: #{tpu_custom_call.1} parent=11 // pred_region
          _
        $region28: #{tpu_custom_call.1} parent=11 // pred_fallthru
          _
      $region12: #{tpu_custom_call.1} parent=5 // pred_fallthru
        _
      %p198 = scmp.lt.s32.totalorder %s17, 2
      // Predicated region
      $region29: #{tpu_custom_call.1} parent=5 // pred_check
        %p199 = pneg %p198
      $region30: #{tpu_custom_call.1} parent=5 // pred_check_branch
        %201 = sbr.rel (%p199) target = $region32
      $region31: #{tpu_custom_call.1} parent=5 // pred_region
        // Predicated region
        $region33: #{tpu_custom_call.1} parent=31 // pred_check
          %p202 = pneg %p53
        $region34: #{tpu_custom_call.1} parent=31 // pred_check_branch
          %204 = sbr.rel (%p202) target = $region36
        $region35: #{tpu_custom_call.1} parent=31 // pred_region
          %s205 = sand.u32 %s43, 1
          %s206 = scalar_lea.sflag [#allocation7], %s205
          %s207 = sand.u32 %s43, 1
          %s208 = smul.addr %s207, 32
          %s209 = scalar_lea.vmem [#allocation6], %s208
          %s210 = ssub.s32 1, %s24
          %s211 = smul.u32 %s25, %s210
          %s212 = smul.u32 2, %s211
          %s214 = ssub.s32 512, 512
          %215 = vsyncadd %s206, %s214
          %s216 = smul.addr %s212, 128
          %s217 = scalar_lea.hbm %s0, %s216
          %s218 = sshll.u32 %s209, 4
          %s219 = int_to_ptr.vmem [resolvable:$true] %s218
          %224 = dma.hbm_to_vmem [thread:$0]  %s217, 512, %s219, %s206, 256, 256, 16
        $region36: #{tpu_custom_call.1} parent=31 // pred_fallthru
          _
      $region32: #{tpu_custom_call.1} parent=5 // pred_fallthru
        _
      %p225 = scmp.le.s32.totalorder 1, %s17
      %p226 = scmp.lt.s32.totalorder %s17, 3
      %p227 = pnand %p225, %p226
      %p228 = pneg %p227
      // Predicated region
      $region37: #{tpu_custom_call.1} parent=5 // pred_check
        _
      $region38: #{tpu_custom_call.1} parent=5 // pred_check_branch
        %230 = sbr.rel (%p227) target = $region40
      $region39: #{tpu_custom_call.1} parent=5 // pred_region
        %s231 = ssub.s32 %s17, 1
        %s232 = sand.u32 %s46, 1
        %s233 = scalar_lea.sflag [#allocation7], %s232
        %s234 = sand.u32 %s46, 1
        %s235 = smul.addr %s234, 32
        %s236 = scalar_lea.vmem [#allocation6], %s235
        // Predicated region
        $region41: #{tpu_custom_call.1} parent=39 // pred_check
          %p237 = pneg %p59
        $region42: #{tpu_custom_call.1} parent=39 // pred_check_branch
          %239 = sbr.rel (%p237) target = $region44
        $region43: #{tpu_custom_call.1} parent=39 // pred_region
          %240 = dma.done %s233, 512
        $region44: #{tpu_custom_call.1} parent=39 // pred_fallthru
          _
        %s241 = sand.u32 %s46, 1
        %s242 = scalar_lea.sflag [#allocation7], %s241
        %s243 = sand.u32 %s46, 1
        %s244 = smul.addr %s243, 32
        %s245 = scalar_lea.vmem [#allocation6], %s244
        %p246 = pneg %p59
        %p247 = pneg %p56
        %p248 = pneg %p80
        %p249 = pneg %p77
        %p250 = pneg %p101
        %p251 = pneg %p98
        %p252 = pneg %p122
        %p253 = pneg %p119
        %p254 = pneg %p143
        %p255 = pneg %p140
        %p256 = pneg %p171
        %p257 = pneg %p168
        %s258 = sand.u32 %s158, 1
        %s259 = scalar_lea.sflag [#allocation8], %s258
        %s260 = sand.u32 %s158, 1
        %s261 = smul.addr %s260, 32
        %s262 = scalar_lea.vmem [#allocation9], %s261
        %s263 = ssub.s32 1, %s26
        %s264 = smul.u32 %s27, %s263
        %s265 = smul.u32 2, %s264
        %s266 = smul.u32 %s27, %s26
        %s267 = smul.u32 2, %s266
        %p268 = scmp.eq.s32.totalorder %s26, 0
        %p269 = scmp.eq.s32.totalorder %s27, 0
        %p270 = pnand %p268, %p269
        %p271 = pneg %p270
        // Predicated region
        $region45: #{tpu_custom_call.1} parent=39 // pred_check
          _
        $region46: #{tpu_custom_call.1} parent=39 // pred_check_branch
          %273 = sbr.rel (%p270) target = $region48
        $region47: #{tpu_custom_call.1} parent=39 // pred_region
          %vm274 = vcmask 58368
          %275 = vst.msk [vmem:[#allocation3] sm:$0x3] %vm274, 0.0
          %276 = vst.msk [vmem:[#allocation4] sm:$0x3] %vm274, -inf
        $region48: #{tpu_custom_call.1} parent=39 // pred_fallthru
          _
        // Predicated region
        $region49: #{tpu_custom_call.1} parent=39 // pred_check
          %p277 = pneg %p268
        $region50: #{tpu_custom_call.1} parent=39 // pred_check_branch
          %279 = sbr.rel (%p277) target = $region52
        $region51: #{tpu_custom_call.1} parent=39 // pred_region
          %v280 = vld [vmem:[%s236] sm:$0xff]
          %v281 = vld [vmem:[%s236 + $0x8] sm:$0xff]
          %v282 = vld [vmem:[%s236 + $0x10] sm:$0xff]
          %v283 = vld [vmem:[%s236 + $0x18] sm:$0xff]
          %s284 = smul.u32 %s27, 4
          %s285 = smul.addr %s284, 8
          %s286 = scalar_lea.vmem [#allocation2], %s285
          %287 = vst [vmem:[%s286] sm:$0xff] %v280
          %288 = vst [vmem:[%s286 + $0x8] sm:$0xff] %v281
          %289 = vst [vmem:[%s286 + $0x10] sm:$0xff] %v282
          %290 = vst [vmem:[%s286 + $0x18] sm:$0xff] %v283
          %v291 = vld [vmem:[%s236] sm:$0xff]
          %v292 = vld [vmem:[%s236 + $0x8] sm:$0xff]
          %v293 = vld [vmem:[%s236 + $0x10] sm:$0xff]
          %v294 = vld [vmem:[%s236 + $0x18] sm:$0xff]
          %v295 = vld [vmem:[#allocation3] sm:$0x3]
          %v296 = vadd.f32 %v291, %v292
          %297 = vadd.xlane.f32.xlu0 %v296
          %v298 = vpop.xlane.xlu0 %297
          %v299 = vadd.f32 %v293, %v294
          %300 = vadd.xlane.f32.xlu0 %v299
          %v301 = vpop.xlane.xlu0 %300
          %v304 = vlaneseq
          %v305 = vand.u32 %v304, 127
          %v306 = vlaneseq
          %v307 = vshrl.u32 %v306, 7
          %v308 = vsub.s32 %v305, %v307
          %v309 = vrot.slane %v298, %v308
          %v310 = vlaneseq
          %v311 = vshrl.u32 %v310, 7
          %v312 = vsub.s32 %v305, %v311
          %v313 = vrot.slane %v301, %v312
          %vm314 = vcmask 1041409
          %v315 = vsel %vm314, %v313, %v309
          %v317 = vadd.f32 %v295, %v315
          %vm318 = vcmask 58368
          %319 = vst.msk [vmem:[#allocation3] sm:$0x3] %vm318, %v317
          %v320 = vld [vmem:[#allocation4] sm:$0x3]
          %v321 = vmax.f32 %v291, %v292
          %322 = vmax.xlane.f32.xlu0 %v321
          %v323 = vpop.xlane.xlu0 %322
          %v324 = vmax.f32 %v293, %v294
          %325 = vmax.xlane.f32.xlu0 %v324
          %v326 = vpop.xlane.xlu0 %325
          %v329 = vlaneseq
          %v330 = vshrl.u32 %v329, 7
          %v331 = vsub.s32 %v305, %v330
          %v332 = vrot.slane %v323, %v331
          %v333 = vlaneseq
          %v334 = vshrl.u32 %v333, 7
          %v335 = vsub.s32 %v305, %v334
          %v336 = vrot.slane %v326, %v335
          %v337 = vsel %vm314, %v336, %v332
          %v339 = vmax.f32 %v320, %v337
          %340 = vst.msk [vmem:[#allocation4] sm:$0x3] %vm318, %v339
        $region52: #{tpu_custom_call.1} parent=39 // pred_fallthru
          _
        %p341 = scmp.eq.s32.totalorder %s26, 1
        %p342 = pnand %p341, %p269
        %p343 = pneg %p342
        // Predicated region
        $region53: #{tpu_custom_call.1} parent=39 // pred_check
          _
        $region54: #{tpu_custom_call.1} parent=39 // pred_check_branch
          %345 = sbr.rel (%p342) target = $region56
        $region55: #{tpu_custom_call.1} parent=39 // pred_region
          %v346 = vld [vmem:[#allocation3] sm:$0x3]
          %v347 = vmul.f32 %v346, 0.00390625
          %v348 = vld [vmem:[#allocation4] sm:$0x3]
          %v349 = vld [vmem:[%s1] sm:$0xff]
          %v350 = vld [vmem:[%s2] sm:$0x3]
          %v351 = vld [vmem:[%s3] sm:$0xff]
          %v352 = vld [vmem:[%s4] sm:$0x3]
          %vm353 = vcmask 64512
          %v355 = vsel %vm353, %v347, 0
          %357 = vmatprep.subr.mxu0 0.0
          %358 = vmatpush1.msra.mxu0 %v349
          %359 = vmatprep.subr.mxu0 0.0
          %360 = vmatpush1.msra.mxu0 0.0
          %361 = vmatprep.subr.mxu0 0.0
          %362 = vmatpush1.msra.mxu0 0.0
          %363 = vmatprep.subr.mxu0 0.0
          %364 = vmatpush1.msra.mxu0 0.0
          %365 = vmatprep.subr.mxu0 0.0
          %366 = vmatpush1.msra.mxu0 0.0
          %367 = vmatprep.subr.mxu0 0.0
          %368 = vmatpush1.msra.mxu0 0.0
          %369 = vmatprep.subr.mxu0 0.0
          %370 = vmatpush1.msra.mxu0 0.0
          %371 = vmatprep.subr.mxu0 0.0
          %372 = vmatpush1.msra.mxu0 0.0
          %373 = vmatprep.subr.mxu0 0.0
          %374 = vmatpush1.msra.mxu0 0.0
          %375 = vmatprep.subr.mxu0 0.0
          %376 = vmatpush1.msra.mxu0 0.0
          %377 = vmatprep.subr.mxu0 0.0
          %378 = vmatpush1.msra.mxu0 0.0
          %379 = vmatprep.subr.mxu0 0.0
          %380 = vmatpush1.msra.mxu0 0.0
          %381 = vmatprep.subr.mxu0 0.0
          %382 = vmatpush1.msra.mxu0 0.0
          %383 = vmatprep.subr.mxu0 0.0
          %384 = vmatpush1.msra.mxu0 0.0
          %385 = vmatprep.subr.mxu0 0.0
          %386 = vmatpush1.msra.mxu0 0.0
          %387 = vmatprep.subr.mxu0 0.0
          %388 = vmatpush1.msra.mxu0 0.0
          %389 = vmatprep.subr.mxu0 0.0
          %390 = vmatpush1.msra.mxu0 0.0
          %391 = vmatprep.subr.mxu0 0.0
          %392 = vmatpush1.msra.mxu0 0.0
          %393 = vmatprep.subr.mxu0 0.0
          %394 = vmatpush1.msra.mxu0 0.0
          %395 = vmatprep.subr.mxu0 0.0
          %396 = vmatpush1.msra.mxu0 0.0
          %397 = vmatprep.subr.mxu0 0.0
          %398 = vmatpush1.msra.mxu0 0.0
          %399 = vmatprep.subr.mxu0 0.0
          %400 = vmatpush1.msra.mxu0 0.0
          %401 = vmatprep.subr.mxu0 0.0
          %402 = vmatpush1.msra.mxu0 0.0
          %403 = vmatprep.subr.mxu0 0.0
          %404 = vmatpush1.msra.mxu0 0.0
          %405 = vmatprep.subr.mxu0 0.0
          %406 = vmatpush1.msra.mxu0 0.0
          %407 = vmatprep.subr.mxu0 0.0
          %408 = vmatpush1.msra.mxu0 0.0
          %409 = vmatprep.subr.mxu0 0.0
          %410 = vmatpush1.msra.mxu0 0.0
          %411 = vmatprep.subr.mxu0 0.0
          %412 = vmatpush1.msra.mxu0 0.0
          %413 = vmatprep.subr.mxu0 0.0
          %414 = vmatpush1.msra.mxu0 0.0
          %415 = vmatprep.subr.mxu0 0.0
          %416 = vmatpush1.msra.mxu0 0.0
          %417 = vmatprep.subr.mxu0 0.0
          %418 = vmatpush1.msra.mxu0 0.0
          %419 = vmatprep.subr.mxu0 0.0
          %420 = vmatpush1.msra.mxu0 0.0
          %421 = vmatprep.mubr.f32.mxu0 0.0
          %422 = vmatmul.mubr.f32.gmra.mrb[0].mxu0 %v355
          %v423 = vpop.f32.mrb[0].mxu0
          %v424 = vadd.f32 0.0, %v423
          %v425 = vpop.f32.mrb[0].mxu0
          %426 = vdwg.mxu0
          %v427 = vmax.f32 %v424, 0.0
          %vm428 = vcmask 15360
          %v430 = vsel %vm428, %v427, 0
          %vm432 = vcmask 1041408
          %v434 = vsel %vm432, %v350, 0
          %436 = vmatprep.subr.mxu0 0.0
          %437 = vmatpush1.msra.mxu0 %v434
          %438 = vmatprep.subr.mxu0 0.0
          %439 = vmatpush1.msra.mxu0 0.0
          %440 = vmatprep.subr.mxu0 0.0
          %441 = vmatpush1.msra.mxu0 0.0
          %442 = vmatprep.subr.mxu0 0.0
          %443 = vmatpush1.msra.mxu0 0.0
          %444 = vmatprep.subr.mxu0 0.0
          %445 = vmatpush1.msra.mxu0 0.0
          %446 = vmatprep.subr.mxu0 0.0
          %447 = vmatpush1.msra.mxu0 0.0
          %448 = vmatprep.subr.mxu0 0.0
          %449 = vmatpush1.msra.mxu0 0.0
          %450 = vmatprep.subr.mxu0 0.0
          %451 = vmatpush1.msra.mxu0 0.0
          %452 = vmatprep.subr.mxu0 0.0
          %453 = vmatpush1.msra.mxu0 0.0
          %454 = vmatprep.subr.mxu0 0.0
          %455 = vmatpush1.msra.mxu0 0.0
          %456 = vmatprep.subr.mxu0 0.0
          %457 = vmatpush1.msra.mxu0 0.0
          %458 = vmatprep.subr.mxu0 0.0
          %459 = vmatpush1.msra.mxu0 0.0
          %460 = vmatprep.subr.mxu0 0.0
          %461 = vmatpush1.msra.mxu0 0.0
          %462 = vmatprep.subr.mxu0 0.0
          %463 = vmatpush1.msra.mxu0 0.0
          %464 = vmatprep.subr.mxu0 0.0
          %465 = vmatpush1.msra.mxu0 0.0
          %466 = vmatprep.subr.mxu0 0.0
          %467 = vmatpush1.msra.mxu0 0.0
          %468 = vmatprep.subr.mxu0 0.0
          %469 = vmatpush1.msra.mxu0 0.0
          %470 = vmatprep.subr.mxu0 0.0
          %471 = vmatpush1.msra.mxu0 0.0
          %472 = vmatprep.subr.mxu0 0.0
          %473 = vmatpush1.msra.mxu0 0.0
          %474 = vmatprep.subr.mxu0 0.0
          %475 = vmatpush1.msra.mxu0 0.0
          %476 = vmatprep.subr.mxu0 0.0
          %477 = vmatpush1.msra.mxu0 0.0
          %478 = vmatprep.subr.mxu0 0.0
          %479 = vmatpush1.msra.mxu0 0.0
          %480 = vmatprep.subr.mxu0 0.0
          %481 = vmatpush1.msra.mxu0 0.0
          %482 = vmatprep.subr.mxu0 0.0
          %483 = vmatpush1.msra.mxu0 0.0
          %484 = vmatprep.subr.mxu0 0.0
          %485 = vmatpush1.msra.mxu0 0.0
          %486 = vmatprep.subr.mxu0 0.0
          %487 = vmatpush1.msra.mxu0 0.0
          %488 = vmatprep.subr.mxu0 0.0
          %489 = vmatpush1.msra.mxu0 0.0
          %490 = vmatprep.subr.mxu0 0.0
          %491 = vmatpush1.msra.mxu0 0.0
          %492 = vmatprep.subr.mxu0 0.0
          %493 = vmatpush1.msra.mxu0 0.0
          %494 = vmatprep.subr.mxu0 0.0
          %495 = vmatpush1.msra.mxu0 0.0
          %496 = vmatprep.subr.mxu0 0.0
          %497 = vmatpush1.msra.mxu0 0.0
          %498 = vmatprep.subr.mxu0 0.0
          %499 = vmatpush1.msra.mxu0 0.0
          %500 = vmatprep.mubr.f32.mxu0 0.0
          %501 = vmatmul.mubr.f32.gmra.mrb[0].mxu0 %v430
          %v502 = vpop.f32.mrb[0].mxu0
          %v503 = vadd.f32 0.0, %v502
          %v504 = vpop.f32.mrb[0].mxu0
          %505 = vdwg.mxu0
          %v507 = vsel %vm353, %v348, 0
          %509 = vmatprep.subr.mxu0 0.0
          %510 = vmatpush1.msra.mxu0 %v351
          %511 = vmatprep.subr.mxu0 0.0
          %512 = vmatpush1.msra.mxu0 0.0
          %513 = vmatprep.subr.mxu0 0.0
          %514 = vmatpush1.msra.mxu0 0.0
          %515 = vmatprep.subr.mxu0 0.0
          %516 = vmatpush1.msra.mxu0 0.0
          %517 = vmatprep.subr.mxu0 0.0
          %518 = vmatpush1.msra.mxu0 0.0
          %519 = vmatprep.subr.mxu0 0.0
          %520 = vmatpush1.msra.mxu0 0.0
          %521 = vmatprep.subr.mxu0 0.0
          %522 = vmatpush1.msra.mxu0 0.0
          %523 = vmatprep.subr.mxu0 0.0
          %524 = vmatpush1.msra.mxu0 0.0
          %525 = vmatprep.subr.mxu0 0.0
          %526 = vmatpush1.msra.mxu0 0.0
          %527 = vmatprep.subr.mxu0 0.0
          %528 = vmatpush1.msra.mxu0 0.0
          %529 = vmatprep.subr.mxu0 0.0
          %530 = vmatpush1.msra.mxu0 0.0
          %531 = vmatprep.subr.mxu0 0.0
          %532 = vmatpush1.msra.mxu0 0.0
          %533 = vmatprep.subr.mxu0 0.0
          %534 = vmatpush1.msra.mxu0 0.0
          %535 = vmatprep.subr.mxu0 0.0
          %536 = vmatpush1.msra.mxu0 0.0
          %537 = vmatprep.subr.mxu0 0.0
          %538 = vmatpush1.msra.mxu0 0.0
          %539 = vmatprep.subr.mxu0 0.0
          %540 = vmatpush1.msra.mxu0 0.0
          %541 = vmatprep.subr.mxu0 0.0
          %542 = vmatpush1.msra.mxu0 0.0
          %543 = vmatprep.subr.mxu0 0.0
          %544 = vmatpush1.msra.mxu0 0.0
          %545 = vmatprep.subr.mxu0 0.0
          %546 = vmatpush1.msra.mxu0 0.0
          %547 = vmatprep.subr.mxu0 0.0
          %548 = vmatpush1.msra.mxu0 0.0
          %549 = vmatprep.subr.mxu0 0.0
          %550 = vmatpush1.msra.mxu0 0.0
          %551 = vmatprep.subr.mxu0 0.0
          %552 = vmatpush1.msra.mxu0 0.0
          %553 = vmatprep.subr.mxu0 0.0
          %554 = vmatpush1.msra.mxu0 0.0
          %555 = vmatprep.subr.mxu0 0.0
          %556 = vmatpush1.msra.mxu0 0.0
          %557 = vmatprep.subr.mxu0 0.0
          %558 = vmatpush1.msra.mxu0 0.0
          %559 = vmatprep.subr.mxu0 0.0
          %560 = vmatpush1.msra.mxu0 0.0
          %561 = vmatprep.subr.mxu0 0.0
          %562 = vmatpush1.msra.mxu0 0.0
          %563 = vmatprep.subr.mxu0 0.0
          %564 = vmatpush1.msra.mxu0 0.0
          %565 = vmatprep.subr.mxu0 0.0
          %566 = vmatpush1.msra.mxu0 0.0
          %567 = vmatprep.subr.mxu0 0.0
          %568 = vmatpush1.msra.mxu0 0.0
          %569 = vmatprep.subr.mxu0 0.0
          %570 = vmatpush1.msra.mxu0 0.0
          %571 = vmatprep.subr.mxu0 0.0
          %572 = vmatpush1.msra.mxu0 0.0
          %573 = vmatprep.mubr.f32.mxu0 0.0
          %574 = vmatmul.mubr.f32.gmra.mrb[0].mxu0 %v507
          %v575 = vpop.f32.mrb[0].mxu0
          %v576 = vadd.f32 0.0, %v575
          %v577 = vpop.f32.mrb[0].mxu0
          %578 = vdwg.mxu0
          %v579 = vmax.f32 %v576, 0.0
          %v581 = vsel %vm428, %v579, 0
          %v584 = vsel %vm432, %v352, 0
          %586 = vmatprep.subr.mxu0 0.0
          %587 = vmatpush1.msra.mxu0 %v584
          %588 = vmatprep.subr.mxu0 0.0
          %589 = vmatpush1.msra.mxu0 0.0
          %590 = vmatprep.subr.mxu0 0.0
          %591 = vmatpush1.msra.mxu0 0.0
          %592 = vmatprep.subr.mxu0 0.0
          %593 = vmatpush1.msra.mxu0 0.0
          %594 = vmatprep.subr.mxu0 0.0
          %595 = vmatpush1.msra.mxu0 0.0
          %596 = vmatprep.subr.mxu0 0.0
          %597 = vmatpush1.msra.mxu0 0.0
          %598 = vmatprep.subr.mxu0 0.0
          %599 = vmatpush1.msra.mxu0 0.0
          %600 = vmatprep.subr.mxu0 0.0
          %601 = vmatpush1.msra.mxu0 0.0
          %602 = vmatprep.subr.mxu0 0.0
          %603 = vmatpush1.msra.mxu0 0.0
          %604 = vmatprep.subr.mxu0 0.0
          %605 = vmatpush1.msra.mxu0 0.0
          %606 = vmatprep.subr.mxu0 0.0
          %607 = vmatpush1.msra.mxu0 0.0
          %608 = vmatprep.subr.mxu0 0.0
          %609 = vmatpush1.msra.mxu0 0.0
          %610 = vmatprep.subr.mxu0 0.0
          %611 = vmatpush1.msra.mxu0 0.0
          %612 = vmatprep.subr.mxu0 0.0
          %613 = vmatpush1.msra.mxu0 0.0
          %614 = vmatprep.subr.mxu0 0.0
          %615 = vmatpush1.msra.mxu0 0.0
          %616 = vmatprep.subr.mxu0 0.0
          %617 = vmatpush1.msra.mxu0 0.0
          %618 = vmatprep.subr.mxu0 0.0
          %619 = vmatpush1.msra.mxu0 0.0
          %620 = vmatprep.subr.mxu0 0.0
          %621 = vmatpush1.msra.mxu0 0.0
          %622 = vmatprep.subr.mxu0 0.0
          %623 = vmatpush1.msra.mxu0 0.0
          %624 = vmatprep.subr.mxu0 0.0
          %625 = vmatpush1.msra.mxu0 0.0
          %626 = vmatprep.subr.mxu0 0.0
          %627 = vmatpush1.msra.mxu0 0.0
          %628 = vmatprep.subr.mxu0 0.0
          %629 = vmatpush1.msra.mxu0 0.0
          %630 = vmatprep.subr.mxu0 0.0
          %631 = vmatpush1.msra.mxu0 0.0
          %632 = vmatprep.subr.mxu0 0.0
          %633 = vmatpush1.msra.mxu0 0.0
          %634 = vmatprep.subr.mxu0 0.0
          %635 = vmatpush1.msra.mxu0 0.0
          %636 = vmatprep.subr.mxu0 0.0
          %637 = vmatpush1.msra.mxu0 0.0
          %638 = vmatprep.subr.mxu0 0.0
          %639 = vmatpush1.msra.mxu0 0.0
          %640 = vmatprep.subr.mxu0 0.0
          %641 = vmatpush1.msra.mxu0 0.0
          %642 = vmatprep.subr.mxu0 0.0
          %643 = vmatpush1.msra.mxu0 0.0
          %644 = vmatprep.subr.mxu0 0.0
          %645 = vmatpush1.msra.mxu0 0.0
          %646 = vmatprep.subr.mxu0 0.0
          %647 = vmatpush1.msra.mxu0 0.0
          %648 = vmatprep.subr.mxu0 0.0
          %649 = vmatpush1.msra.mxu0 0.0
          %650 = vmatprep.mubr.f32.mxu0 0.0
          %651 = vmatmul.mubr.f32.gmra.mrb[0].mxu0 %v581
          %v652 = vpop.f32.mrb[0].mxu0
          %v653 = vadd.f32 0.0, %v652
          %v654 = vpop.f32.mrb[0].mxu0
          %655 = vdwg.mxu0
          %v656 = vmul.f32 %v653, %v653
          %vm657 = vcmask 58368
          %v658 = vsel %vm657, %v656, 0.0
          %v659 = vrot.slane %v658, 4
          %v660 = vadd.f32 %v658, %v659
          %v661 = vrot.slane %v660, 2
          %v662 = vadd.f32 %v660, %v661
          %v663 = vrot.slane %v662, 1
          %v664 = vadd.f32 %v662, %v663
          %v665 = vrsqrt.pop %v664
          %v666 = vmul.f32 %v664, %v665
          %vm667 = vcmp.eq.f32.partialorder %v664, inf
          %v668 = vsel %vm667, %v664, %v666
          %vm669 = vcmp.eq.f32.partialorder %v664, 0.0
          %v670 = vand.u32 %v664, 2147483648
          %v671 = vsel %vm669, %v670, %v668
          %v672 = vmul.f32 %v503, %v503
          %v673 = vsel %vm657, %v672, 0.0
          %v674 = vrot.slane %v673, 4
          %v675 = vadd.f32 %v673, %v674
          %v676 = vrot.slane %v675, 2
          %v677 = vadd.f32 %v675, %v676
          %v678 = vrot.slane %v677, 1
          %v679 = vadd.f32 %v677, %v678
          %v680 = vrsqrt.pop %v679
          %v681 = vmul.f32 %v679, %v680
          %vm682 = vcmp.eq.f32.partialorder %v679, inf
          %v683 = vsel %vm682, %v679, %v681
          %vm684 = vcmp.eq.f32.partialorder %v679, 0.0
          %v685 = vand.u32 %v679, 2147483648
          %v686 = vsel %vm684, %v685, %v683
          %v687 = vadd.f32 %v671, %v686
          %v688 = vrcp.pop %v687
          %v689 = vmul.f32 1.0, %v688
          %v690 = vmul.f32 %v671, %v689
          %v691 = vmul.f32 %v690, %v653
          %v692 = vmul.f32 %v686, %v689
          %v693 = vmul.f32 %v692, %v503
          %v694 = vadd.f32 %v691, %v693
          %v695 = vxor.u32 %v694, 2147483648
          %v696 = vmul.f32 %v695, 1.442695
          %v697 = vpow.pop %v696
          %v698 = vadd.f32 %v697, 1.0
          %v699 = vrcp.pop %v698
          %v700 = vmul.f32 1.0, %v699
          %v701 = vlaneseq
          %v702 = vshrl.u32 %v701, 7
          %v703 = vsub.s32 0, %v702
          %v704 = vrot.slane %v700, %v703
          %706 = vbcast.lane.b32.xlu0 %v704, 256
          %v707 = vpop.permute.xlu0 %706
          %v708 = vlaneseq
          %v709 = vshrl.u32 %v708, 7
          %v710 = vsub.s32 1, %v709
          %v711 = vrot.slane %v700, %v710
          %713 = vbcast.lane.b32.xlu0 %v711, 256
          %v714 = vpop.permute.xlu0 %713
          %vm715 = vcmask 7168
          %716 = vst.msk [vmem:[#allocation5] sm:$0xff] %vm715, %v707
          %717 = vst.msk [vmem:[#allocation5 + $0x8] sm:$0xff] %vm715, %v714
        $region56: #{tpu_custom_call.1} parent=39 // pred_fallthru
          _
        // Predicated region
        $region57: #{tpu_custom_call.1} parent=39 // pred_check
          %p718 = pneg %p341
        $region58: #{tpu_custom_call.1} parent=39 // pred_check_branch
          %720 = sbr.rel (%p718) target = $region60
        $region59: #{tpu_custom_call.1} parent=39 // pred_region
          %s721 = smul.u32 %s27, 4
          %s722 = smul.addr %s721, 8
          %s723 = scalar_lea.vmem [#allocation2], %s722
          %v724 = vld [vmem:[%s723] sm:$0xff]
          %v725 = vld [vmem:[%s723 + $0x8] sm:$0xff]
          %v726 = vld [vmem:[%s723 + $0x10] sm:$0xff]
          %v727 = vld [vmem:[%s723 + $0x18] sm:$0xff]
          %v728 = vld [vmem:[#allocation5] sm:$0xff]
          %v729 = vld [vmem:[#allocation5 + $0x8] sm:$0xff]
          %731 = vset.pattern.permute.xlu0 0
          %732 = vperm.xlu0 %731, %v728
          %v733 = vpop.permute.xlu0 %732
          %736 = vset.pattern.permute.xlu0 0
          %737 = vperm.xlu0 %736, %v729
          %v738 = vpop.permute.xlu0 %737
          %v740 = vmul.f32 %v724, %v733
          %v741 = vmul.f32 %v725, %v733
          %v742 = vmul.f32 %v726, %v738
          %v743 = vmul.f32 %v727, %v738
          %744 = vst [vmem:[%s262] sm:$0xff] %v740
          %745 = vst [vmem:[%s262 + $0x8] sm:$0xff] %v741
          %746 = vst [vmem:[%s262 + $0x10] sm:$0xff] %v742
          %747 = vst [vmem:[%s262 + $0x18] sm:$0xff] %v743
        $region60: #{tpu_custom_call.1} parent=39 // pred_fallthru
          _
        %s748 = sand.u32 %s158, 1
        %s749 = scalar_lea.sflag [#allocation8], %s748
        %s750 = sand.u32 %s158, 1
        %s751 = smul.addr %s750, 32
        %s752 = scalar_lea.vmem [#allocation9], %s751
        // Predicated region
        $region61: #{tpu_custom_call.1} parent=39 // pred_check
          %p753 = pneg %p168
        $region62: #{tpu_custom_call.1} parent=39 // pred_check_branch
          %755 = sbr.rel (%p753) target = $region64
        $region63: #{tpu_custom_call.1} parent=39 // pred_region
          %s756 = smul.u32 %s27, %s26
          %s757 = smul.u32 2, %s756
          %s759 = ssub.s32 512, 512
          %760 = vsyncadd %s749, %s759
          %s761 = smul.addr %s757, 128
          %s762 = scalar_lea.hbm %s5, %s761
          %s763 = sshll.u32 %s752, 4
          %s764 = int_to_ptr.vmem [resolvable:$true] %s763
          %769 = dma.vmem_to_hbm [thread:$0]  %s764, 512, %s762, %s749, 256, 256, 16
        $region64: #{tpu_custom_call.1} parent=39 // pred_fallthru
          _
      $region40: #{tpu_custom_call.1} parent=5 // pred_fallthru
        _
      %p770 = scmp.le.s32.totalorder 2, %s17
      // Predicated region
      $region65: #{tpu_custom_call.1} parent=5 // pred_check
        %p771 = pneg %p770
      $region66: #{tpu_custom_call.1} parent=5 // pred_check_branch
        %773 = sbr.rel (%p771) target = $region68
      $region67: #{tpu_custom_call.1} parent=5 // pred_region
        %s774 = ssub.s32 %s17, 2
        // Predicated region
        $region69: #{tpu_custom_call.1} parent=67 // pred_check
          %p775 = pneg %p174
        $region70: #{tpu_custom_call.1} parent=67 // pred_check_branch
          %777 = sbr.rel (%p775) target = $region72
        $region71: #{tpu_custom_call.1} parent=67 // pred_region
          %s778 = sand.u32 %s159, 1
          %s779 = scalar_lea.sflag [#allocation8], %s778
          %s780 = sand.u32 %s159, 1
          %s781 = smul.addr %s780, 32
          %s782 = scalar_lea.vmem [#allocation9], %s781
          %783 = dma.done %s779, 512
        $region72: #{tpu_custom_call.1} parent=67 // pred_fallthru
          _
      $region68: #{tpu_custom_call.1} parent=5 // pred_fallthru
        _
    $region6: #{tpu_custom_call.1} parent=1 // loop_footer
      %s21 = sadd.s32 1, %s17
    $region7: #{tpu_custom_call.1} parent=1 // loop_footer_branch
      %16 = sbr.rel target = $region3
    $region8: #{tpu_custom_call.1} parent=1 // loop_exit
      _
    %784 = vsyncpa [#allocation7], 1
    %s785 = scalar_lea.sflag [#allocation7], 1
    %786 = vsyncpa %s785, 1
    %787 = vsyncpa [#allocation8], 1
    %s788 = scalar_lea.sflag [#allocation8], 1
    %789 = vsyncpa %s788, 1

</llo_original>
